<compile_context>
chip_gen: v7x
topology: tpu7x:2x2x1
jax: 0.10.0
libtpu: 0.0.40
codegen_flags: <defaults>
</compile_context>

<pallas_src>
import jax
import jax.numpy as jnp
from jax.experimental import pallas as pl
from jax.experimental.pallas import tpu as pltpu

MARGIN = 20.0  # Model.__init__ uses ContrastiveLoss(config, margin=20)

_LANE = 128
_SUBLANE = 8


def _round_up(x, m):
    return (x + m - 1) // m * m


def _syncnet_loss_kernel(x_ref, w_ref, b_ref, wpos_ref, wneg_ref, o_ref, acc_ref):
    """K-blocked fused projection-difference + contrastive-loss reduction.

    x_ref:    (B_pad, tk)    bf16  -- [v_flat | a_flat] slice along K
    w_ref:    (tk, D_pad)    bf16  -- [Wv ; -Wa] slice along K
    b_ref:    (1, D_pad)     f32   -- bv - ba
    wpos_ref: (B_pad, 1)     f32   -- mask * y / (2*B)
    wneg_ref: (B_pad, 1)     f32   -- mask * (1 - y) / (2*B)
    o_ref:    (1, 1)         f32   -- scalar loss (SMEM)
    acc_ref:  (B_pad, D_pad) f32   -- VMEM diff accumulator
    """
    k = pl.program_id(0)

    @pl.when(k == 0)
    def _():
        acc_ref[...] = jnp.zeros_like(acc_ref)

    acc_ref[...] += jnp.dot(x_ref[...], w_ref[...],
                            preferred_element_type=jnp.float32)

    @pl.when(k == pl.num_programs(0) - 1)
    def _():
        diff = acc_ref[...] + b_ref[...]                        # (B_pad, D_pad)
        dist_sq = jnp.sum(diff * diff, axis=1, keepdims=True)   # (B_pad, 1)
        dist = jnp.sqrt(dist_sq)
        clamped = jnp.maximum(MARGIN - dist, 0.0)               # torch.clamp(min=0)
        loss = wpos_ref[...] * dist_sq + wneg_ref[...] * clamped * clamped
        o_ref[0, 0] = jnp.sum(loss)                             # 1/(2B) folded in


def model_forward(visual_input, target_prediction, audio_features, params, *, tk=512):
    """Replicates Model.forward: loss(syncnet.visual(v), syncnet.audio(a), y)."""
    B = visual_input.shape[0]
    wv, bv, wa, ba = params
    Fv, D = wv.shape
    Fa = wa.shape[0]

    v_flat = visual_input.reshape(B, -1).astype(jnp.float32)
    a_flat = audio_features.reshape(B, -1).astype(jnp.float32)
    y = target_prediction.reshape(B).astype(jnp.float32)

    # Fused difference projection:  diff = [v | a] @ [Wv ; -Wa] + (bv - ba)
    x = jnp.concatenate([v_flat, a_flat], axis=1)          # (B, Fv+Fa)
    w = jnp.concatenate([wv, -wa], axis=0)                  # (Fv+Fa, D)
    b = (bv - ba).reshape(1, D)

    # Pad to vreg/MXU friendly shapes; zero padding is loss-neutral because the
    # padded rows get zero loss weights and padded columns give zero diff.
    B_pad = _round_up(B, _SUBLANE)
    D_pad = _round_up(D, _LANE)
    K = Fv + Fa
    tk = min(tk, _round_up(K, _LANE))
    K_pad = _round_up(K, tk)
    n_k = K_pad // tk

    x_p = jnp.zeros((B_pad, K_pad), jnp.bfloat16).at[:B, :K].set(
        x.astype(jnp.bfloat16))
    w_p = jnp.zeros((K_pad, D_pad), jnp.bfloat16).at[:K, :D].set(
        w.astype(jnp.bfloat16))
    b_p = jnp.zeros((1, D_pad), jnp.float32).at[:, :D].set(b)

    # Per-row loss weights: padding mask and the 1/(2*B) scale folded in.
    scale = 1.0 / (2.0 * B)
    w_pos = jnp.zeros((B_pad, 1), jnp.float32).at[:B, 0].set(y * scale)
    w_neg = jnp.zeros((B_pad, 1), jnp.float32).at[:B, 0].set((1.0 - y) * scale)

    cost = pl.CostEstimate(
        flops=2 * B_pad * K_pad * D_pad,
        transcendentals=B_pad,
        bytes_accessed=(x_p.size * 2 + w_p.size * 2
                        + (b_p.size + w_pos.size + w_neg.size) * 4 + 4),
    )

    out = pl.pallas_call(
        _syncnet_loss_kernel,
        out_shape=jax.ShapeDtypeStruct((1, 1), jnp.float32),
        grid_spec=pltpu.PrefetchScalarGridSpec(
            num_scalar_prefetch=0,
            grid=(n_k,),
            in_specs=[
                pl.BlockSpec((B_pad, tk), lambda k: (0, k)),
                pl.BlockSpec((tk, D_pad), lambda k: (k, 0)),
                pl.BlockSpec((1, D_pad), lambda k: (0, 0)),
                pl.BlockSpec((B_pad, 1), lambda k: (0, 0)),
                pl.BlockSpec((B_pad, 1), lambda k: (0, 0)),
            ],
            out_specs=pl.BlockSpec(memory_space=pltpu.MemorySpace.SMEM),
            scratch_shapes=[pltpu.VMEM((B_pad, D_pad), jnp.float32)],
        ),
        compiler_params=pltpu.CompilerParams(
            dimension_semantics=("arbitrary",),
        ),
        cost_estimate=cost,
    )(x_p, w_p, b_p, w_pos, w_neg)
    return out[0, 0]


def make_params(key, feat_v, feat_a, embed_dim):
    """Deterministic synthetic SyncNet parameters (weights_init ~ N(0, 0.02))."""
    k1, k2, k3, k4 = jax.random.split(key, 4)
    wv = 0.02 * jax.random.normal(k1, (feat_v, embed_dim), dtype=jnp.float32)
    bv = 0.02 * jax.random.normal(k2, (1, embed_dim), dtype=jnp.float32)
    wa = 0.02 * jax.random.normal(k3, (feat_a, embed_dim), dtype=jnp.float32)
    ba = 0.02 * jax.random.normal(k4, (1, embed_dim), dtype=jnp.float32)
    return wv, bv, wa, ba


def reference_forward(visual_input, target_prediction, audio_features, params):
    """Pure-JAX f32 reference for verification (mirrors the PyTorch math)."""
    B = visual_input.shape[0]
    wv, bv, wa, ba = params
    x0 = visual_input.reshape(B, -1) @ wv + bv.reshape(-1)
    x1 = audio_features.reshape(B, -1) @ wa + ba.reshape(-1)
    y = target_prediction.astype(jnp.float32)
    diff = x0 - x1
    dist_sq = jnp.sum(diff ** 2, axis=1)
    dist = jnp.sqrt(dist_sq)
    clamped = jnp.maximum(MARGIN - dist, 0.0)
    loss = y * dist_sq + (1.0 - y) * clamped ** 2
    return jnp.sum(loss) / 2.0 / B


if __name__ == "__main__":
    key = jax.random.PRNGKey(0)
    k_v, k_a, k_y, k_p = jax.random.split(key, 4)

    B, C, H, W = 2, 3, 16, 16          # visual_input: NCHW
    Fa_rows, Fa_cols = 12, 20          # audio_features: (B, 1, 12, 20)
    D = 32                             # shared embedding dim

    visual_input = jax.random.normal(k_v, (B, C, H, W), dtype=jnp.float32)
    audio_features = jax.random.normal(k_a, (B, 1, Fa_rows, Fa_cols),
                                       dtype=jnp.float32)
    target_prediction = jax.random.bernoulli(k_y, 0.5, (B,)).astype(jnp.float32)

    params = make_params(k_p, C * H * W, Fa_rows * Fa_cols, D)

    loss = model_forward(visual_input, target_prediction, audio_features, params)
    loss = jax.block_until_ready(loss)

    ref = reference_forward(visual_input, target_prediction, audio_features, params)
    # bf16 weights/activations in the MXU -> loosened tolerance vs f32 reference.
    assert jnp.allclose(loss, ref, rtol=2e-2, atol=2e-2), (loss, ref)

    print("KERNEL_OK")
</pallas_src>

<mosaic_0001>
module attributes {stable_mosaic.version = 11 : i64} {
  func.func @_syncnet_loss_kernel(%arg0: i32, %arg1: memref<8x512xbf16, #tpu.memory_space<vmem>>, %arg2: memref<512x128xbf16, #tpu.memory_space<vmem>>, %arg3: memref<1x128xf32, #tpu.memory_space<vmem>>, %arg4: memref<8x1xf32, #tpu.memory_space<vmem>>, %arg5: memref<8x1xf32, #tpu.memory_space<vmem>>, %arg6: memref<1x1xf32, #tpu.memory_space<smem>>, %arg7: memref<8x128xf32, #tpu.memory_space<vmem>>) attributes {dimension_semantics = [#tpu.dimension_semantics<arbitrary>], iteration_bounds = array<i64: 2>, scalar_prefetch = 0 : i64, scratch_operands = 1 : i64, tpu.core_type = #tpu.core_type<tc>, window_params = [{transform_indices = @transform_0, window_bounds = array<i64: 8, 512>}, {transform_indices = @transform_1, window_bounds = array<i64: 512, 128>}, {pipeline_mode = #tpu.pipeline_mode<synchronous>, transform_indices = @transform_2, window_bounds = array<i64: 1, 128>}, {pipeline_mode = #tpu.pipeline_mode<synchronous>, transform_indices = @transform_3, window_bounds = array<i64: 8, 1>}, {pipeline_mode = #tpu.pipeline_mode<synchronous>, transform_indices = @transform_4, window_bounds = array<i64: 8, 1>}, {transform_indices = @transform_5, window_bounds = array<i64: 1, 1>}]} {
    %c0_i32 = arith.constant 0 : i32
    %0 = arith.cmpi eq, %arg0, %c0_i32 : i32
    %1 = arith.extui %0 : i1 to i32
    %c0_i32_0 = arith.constant 0 : i32
    %2 = arith.cmpi ne, %1, %c0_i32_0 : i32
    scf.if %2 {
      %cst_9 = arith.constant 0.000000e+00 : f32
      %12 = vector.broadcast %cst_9 : f32 to vector<8x128xf32>
      %c0_10 = arith.constant 0 : index
      %c0_11 = arith.constant 0 : index
      %13 = vector.load %arg7[%c0_10, %c0_11] : memref<8x128xf32, #tpu.memory_space<vmem>>, vector<8x128xf32>
      tpu.vector_store %arg7[%c0_10, %c0_11], %12 {strides = array<i32>} : memref<8x128xf32, #tpu.memory_space<vmem>>, vector<8x128xf32>,
    } else {
    }
    %c0 = arith.constant 0 : index
    %c0_1 = arith.constant 0 : index
    %3 = vector.load %arg7[%c0, %c0_1] : memref<8x128xf32, #tpu.memory_space<vmem>>, vector<8x128xf32>
    %c0_2 = arith.constant 0 : index
    %c0_3 = arith.constant 0 : index
    %4 = vector.load %arg1[%c0_2, %c0_3] : memref<8x512xbf16, #tpu.memory_space<vmem>>, vector<8x512xbf16>
    %c0_4 = arith.constant 0 : index
    %c0_5 = arith.constant 0 : index
    %5 = vector.load %arg2[%c0_4, %c0_5] : memref<512x128xbf16, #tpu.memory_space<vmem>>, vector<512x128xbf16>
    %cst = arith.constant dense<0.000000e+00> : vector<8x128xf32>
    %6 = tpu.matmul %4, %5, %cst {dimension_numbers = #tpu.dot_dimension_numbers<[1], [0], [0], [1], [0, 0, 1, 1], [], []>} : vector<8x512xbf16>, vector<512x128xbf16>, vector<8x128xf32> -> vector<8x128xf32>
    %7 = arith.addf %3, %6 : vector<8x128xf32>
    %c0_6 = arith.constant 0 : index
    %c0_7 = arith.constant 0 : index
    %8 = vector.load %arg7[%c0_6, %c0_7] : memref<8x128xf32, #tpu.memory_space<vmem>>, vector<8x128xf32>
    tpu.vector_store %arg7[%c0_6, %c0_7], %7 {strides = array<i32>} : memref<8x128xf32, #tpu.memory_space<vmem>>, vector<8x128xf32>,
    %c1_i32 = arith.constant 1 : i32
    %9 = arith.cmpi eq, %arg0, %c1_i32 : i32
    %10 = arith.extui %9 : i1 to i32
    %c0_i32_8 = arith.constant 0 : i32
    %11 = arith.cmpi ne, %10, %c0_i32_8 : i32
    scf.if %11 {
      %c0_9 = arith.constant 0 : index
      %c0_10 = arith.constant 0 : index
      %12 = vector.load %arg7[%c0_9, %c0_10] : memref<8x128xf32, #tpu.memory_space<vmem>>, vector<8x128xf32>
      %c0_11 = arith.constant 0 : index
      %c0_12 = arith.constant 0 : index
      %13 = vector.load %arg3[%c0_11, %c0_12] : memref<1x128xf32, #tpu.memory_space<vmem>>, vector<1x128xf32>
      %14 = vector.broadcast %13 : vector<1x128xf32> to vector<8x128xf32>
      %15 = arith.addf %12, %14 : vector<8x128xf32>
      %16 = arith.mulf %15, %15 : vector<8x128xf32>
      %cst_13 = arith.constant dense<0.000000e+00> : vector<8xf32>
      %17 = vector.multi_reduction <add>, %16, %cst_13 [1] : vector<8x128xf32> to vector<8xf32>
      %18 = vector.shape_cast %17 : vector<8xf32> to vector<8x1xf32>
      %19 = math.sqrt %18 : vector<8x1xf32>
      %cst_14 = arith.constant 2.000000e+01 : f32
      %20 = vector.broadcast %cst_14 : f32 to vector<8x1xf32>
      %21 = arith.subf %20, %19 : vector<8x1xf32>
      %cst_15 = arith.constant 0.000000e+00 : f32
      %22 = vector.broadcast %cst_15 : f32 to vector<8x1xf32>
      %23 = arith.maximumf %21, %22 : vector<8x1xf32>
      %c0_16 = arith.constant 0 : index
      %c0_17 = arith.constant 0 : index
      %24 = vector.load %arg4[%c0_16, %c0_17] : memref<8x1xf32, #tpu.memory_space<vmem>>, vector<8x1xf32>
      %25 = arith.mulf %24, %18 : vector<8x1xf32>
      %c0_18 = arith.constant 0 : index
      %c0_19 = arith.constant 0 : index
      %26 = vector.load %arg5[%c0_18, %c0_19] : memref<8x1xf32, #tpu.memory_space<vmem>>, vector<8x1xf32>
      %27 = arith.mulf %26, %23 : vector<8x1xf32>
      %28 = arith.mulf %27, %23 : vector<8x1xf32>
      %29 = arith.addf %25, %28 : vector<8x1xf32>
      %30 = vector.shape_cast %29 : vector<8x1xf32> to vector<1x8x1xf32>
      %cst_20 = arith.constant dense<0.000000e+00> : vector<1xf32>
      %31 = vector.multi_reduction <add>, %30, %cst_20 [1, 2] : vector<1x8x1xf32> to vector<1xf32>
      %32 = vector.shape_cast %31 : vector<1xf32> to vector<1x1x1xf32>
      %33 = vector.extract %32[0, 0, 0] : f32 from vector<1x1x1xf32>
      %c0_21 = arith.constant 0 : index
      %c0_22 = arith.constant 0 : index
      %34 = memref.load %arg6[%c0_21, %c0_22] : memref<1x1xf32, #tpu.memory_space<smem>>
      memref.store %33, %arg6[%c0_21, %c0_22] : memref<1x1xf32, #tpu.memory_space<smem>>
    } else {
    }
    return
  }
  func.func @transform_0(%arg0: i32) -> (i32, i32) {
    %c0_i32 = arith.constant 0 : i32
    %c0_i32_0 = arith.constant 0 : i32
    return %c0_i32, %arg0 : i32, i32
  }
  func.func @transform_1(%arg0: i32) -> (i32, i32) {
    %c0_i32 = arith.constant 0 : i32
    %c0_i32_0 = arith.constant 0 : i32
    return %arg0, %c0_i32 : i32, i32
  }
  func.func @transform_2(%arg0: i32) -> (i32, i32) {
    %c0_i32 = arith.constant 0 : i32
    %c0_i32_0 = arith.constant 0 : i32
    %c0_i32_1 = arith.constant 0 : i32
    return %c0_i32, %c0_i32_0 : i32, i32
  }
  func.func @transform_3(%arg0: i32) -> (i32, i32) {
    %c0_i32 = arith.constant 0 : i32
    %c0_i32_0 = arith.constant 0 : i32
    %c0_i32_1 = arith.constant 0 : i32
    return %c0_i32, %c0_i32_0 : i32, i32
  }
  func.func @transform_4(%arg0: i32) -> (i32, i32) {
    %c0_i32 = arith.constant 0 : i32
    %c0_i32_0 = arith.constant 0 : i32
    %c0_i32_1 = arith.constant 0 : i32
    return %c0_i32, %c0_i32_0 : i32, i32
  }
  func.func @transform_5(%arg0: i32) -> (i32, i32) {
    %c0_i32 = arith.constant 0 : i32
    %c0_i32_0 = arith.constant 0 : i32
    %c0_i32_1 = arith.constant 0 : i32
    return %c0_i32, %c0_i32_0 : i32, i32
  }
}

</mosaic_0001>

<llo_original>
// kernel: tpu_custom_call.1
$region0: #{tpu_custom_call.1}
  #allocation0 [shape = 'u32[]', space=smem, size = 0x4, offset = 0x4, fixed_abs, tag = 'smem constant byte address 0x4 - core index']
  #allocation1 [shape = 'u32[144,128]{1,0:T(1,128)}', space=vmem, size = 0x12000, scoped, tag = 'internal scratch']
  #allocation2 [shape = 'f32[8,128]{1,0:T(8,128)}', space=vmem, size = 0x1000, scoped, tag = 'scratch operand']
  %s0 = inlined_call_operand.hbm [shape: bf16[8,1024], index: 0, kind: input, shape index: {}]
  %s1 = inlined_call_operand.hbm [shape: bf16[1024,128], index: 1, kind: input, shape index: {}]
  %s2 = inlined_call_operand.vmem [shape: f32[1,128], index: 2, kind: input, shape index: {}]
  %s3 = inlined_call_operand.vmem [shape: f32[8,1], index: 3, kind: input, shape index: {}]
  %s4 = inlined_call_operand.vmem [shape: f32[8,1], index: 4, kind: input, shape index: {}]
  %s5 = inlined_call_operand.hbm [shape: f32[1,1], index: 5, kind: output, shape index: {}]
  %s6 = sld [smem:[#allocation0]]
  $region69: #{tpu_custom_call.1} parent=0
    _
  %s8 = ssub.s32 1, %s6
  %s9 = scalar_select 0, %s8, %s6
  $region1: #{tpu_custom_call.1} parent=0
    #allocation3 [shape = 'u8[16384]{0}', space=vmem, size = 0x4000, scoped, tag = 'input window, operand 0']
    #allocation4 [shape = 's32[2]{0}', space=sflag, size = 0x8, scoped, tag = 'scoped memory for tpu_custom_call.1']
    #allocation5 [shape = 's32[2]{0}', space=sflag, size = 0x8, scoped, tag = 'scoped memory for tpu_custom_call.1']
    #allocation6 [shape = 'u8[262144]{0}', space=vmem, size = 0x40000, scoped, tag = 'input window, operand 1']
    #allocation7 [shape = 's32[2]{0}', space=sflag, size = 0x8, scoped, tag = 'scoped memory for tpu_custom_call.1']
    #allocation8 [shape = 'u8[512]{0}', space=smem, size = 0x200, scoped, tag = 'output window, operand 0, single buffered']
    %10 = vsyncpa [#allocation4], 0
    %s11 = scalar_lea.sflag [#allocation4], 1
    %12 = vsyncpa %s11, 0
    %13 = vsyncpa [#allocation7], 0
    %s14 = scalar_lea.sflag [#allocation7], 1
    %15 = vsyncpa %s14, 0
    %16 = vsyncpa [#allocation5], 0
    loop: start=0, step=1, limit=4
    $region2: #{tpu_custom_call.1} parent=1 // loop_pre_header
      _
    $region3: #{tpu_custom_call.1} parent=1 // loop_header
      %s18 = sphi 0, %s22
      %p19 = scmp.ge.s32.totalorder %s18, 4
      %s28 = sphi 0, %s30
      %s31 = sphi 0, %s28
      %s32 = sphi 0, %s31
      %s48 = sphi 0, %s32
      %s54 = sphi 0, %s56
      %s57 = sphi 0, %s54
      %s58 = sphi 0, %s57
      %s74 = sphi 0, %s58
      %s78 = sphi 0, %s78
      %s80 = sphi 0, %s78
      %s81 = sphi 0, %s80
      %s95 = sphi 0, %s81
      %s99 = sphi 0, %s99
      %s101 = sphi 0, %s99
      %s102 = sphi 0, %s101
      %s116 = sphi 0, %s102
      %s120 = sphi 0, %s120
      %s122 = sphi 0, %s120
      %s123 = sphi 0, %s122
      %s137 = sphi 0, %s123
      %s141 = sphi 0, %s141
      %s143 = sphi 0, %s141
      %s144 = sphi 0, %s143
      %s158 = sphi 0, %s144
    $region4: #{tpu_custom_call.1} parent=1 // loop_header_branch
      %21 = sbr.rel (%p19) target = $region8
    $region5: #{tpu_custom_call.1} parent=1 // loop_body
      %s23 = ssub.s32 %s18, 1
      %s24 = ssub.s32 %s18, 2
      %s25 = sadd.s32 %s18, 1
      %s26 = ssub.s32 %s18, %s25
      %p27 = scmp.eq.s32.totalorder %s26, 0
      %s29 = sadd.s32 %s28, 1
      %s30 = scalar_select %p27, %s28, %s29
      %p33 = pneg %p27
      %p34 = scmp.eq.s32.totalorder %s18, 1
      %p35 = por %p33, %p34
      %p36 = scmp.ne.s32.totalorder %s28, %s31
      %p37 = scmp.eq.s32.totalorder %s18, 0
      %p38 = por %p36, %p37
      %p39 = scmp.ne.s32.totalorder %s28, %s31
      %p40 = scmp.eq.s32.totalorder %s23, 1
      %p41 = por %p39, %p40
      %p42 = scmp.ne.s32.totalorder %s31, %s32
      %p43 = scmp.eq.s32.totalorder %s23, 0
      %p44 = por %p42, %p43
      %p45 = scmp.ne.s32.totalorder %s31, %s32
      %p46 = scmp.eq.s32.totalorder %s24, 1
      %p47 = por %p45, %p46
      %p49 = scmp.ne.s32.totalorder %s32, %s48
      %p50 = scmp.eq.s32.totalorder %s24, 0
      %p51 = por %p49, %p50
      %s52 = ssub.s32 %s18, %s25
      %p53 = scmp.eq.s32.totalorder %s52, 0
      %s55 = sadd.s32 %s54, 1
      %s56 = scalar_select %p53, %s54, %s55
      %p59 = pneg %p53
      %p60 = scmp.eq.s32.totalorder %s18, 1
      %p61 = por %p59, %p60
      %p62 = scmp.ne.s32.totalorder %s54, %s57
      %p63 = scmp.eq.s32.totalorder %s18, 0
      %p64 = por %p62, %p63
      %p65 = scmp.ne.s32.totalorder %s54, %s57
      %p66 = scmp.eq.s32.totalorder %s23, 1
      %p67 = por %p65, %p66
      %p68 = scmp.ne.s32.totalorder %s57, %s58
      %p69 = scmp.eq.s32.totalorder %s23, 0
      %p70 = por %p68, %p69
      %p71 = scmp.ne.s32.totalorder %s57, %s58
      %p72 = scmp.eq.s32.totalorder %s24, 1
      %p73 = por %p71, %p72
      %p75 = scmp.ne.s32.totalorder %s58, %s74
      %p76 = scmp.eq.s32.totalorder %s24, 0
      %p77 = por %p75, %p76
      %s79 = sadd.s32 %s78, 1
      %p82 = scmp.eq.s32.totalorder %s18, 1
      %p83 = scmp.ne.s32.totalorder %s78, %s80
      %p84 = scmp.eq.s32.totalorder %s18, 0
      %p85 = por %p83, %p84
      %p86 = scmp.ne.s32.totalorder %s78, %s80
      %p87 = scmp.eq.s32.totalorder %s23, 1
      %p88 = por %p86, %p87
      %p89 = scmp.ne.s32.totalorder %s80, %s81
      %p90 = scmp.eq.s32.totalorder %s23, 0
      %p91 = por %p89, %p90
      %p92 = scmp.ne.s32.totalorder %s80, %s81
      %p93 = scmp.eq.s32.totalorder %s24, 1
      %p94 = por %p92, %p93
      %p96 = scmp.ne.s32.totalorder %s81, %s95
      %p97 = scmp.eq.s32.totalorder %s24, 0
      %p98 = por %p96, %p97
      %s100 = sadd.s32 %s99, 1
      %p103 = scmp.eq.s32.totalorder %s18, 1
      %p104 = scmp.ne.s32.totalorder %s99, %s101
      %p105 = scmp.eq.s32.totalorder %s18, 0
      %p106 = por %p104, %p105
      %p107 = scmp.ne.s32.totalorder %s99, %s101
      %p108 = scmp.eq.s32.totalorder %s23, 1
      %p109 = por %p107, %p108
      %p110 = scmp.ne.s32.totalorder %s101, %s102
      %p111 = scmp.eq.s32.totalorder %s23, 0
      %p112 = por %p110, %p111
      %p113 = scmp.ne.s32.totalorder %s101, %s102
      %p114 = scmp.eq.s32.totalorder %s24, 1
      %p115 = por %p113, %p114
      %p117 = scmp.ne.s32.totalorder %s102, %s116
      %p118 = scmp.eq.s32.totalorder %s24, 0
      %p119 = por %p117, %p118
      %s121 = sadd.s32 %s120, 1
      %p124 = scmp.eq.s32.totalorder %s18, 1
      %p125 = scmp.ne.s32.totalorder %s120, %s122
      %p126 = scmp.eq.s32.totalorder %s18, 0
      %p127 = por %p125, %p126
      %p128 = scmp.ne.s32.totalorder %s120, %s122
      %p129 = scmp.eq.s32.totalorder %s23, 1
      %p130 = por %p128, %p129
      %p131 = scmp.ne.s32.totalorder %s122, %s123
      %p132 = scmp.eq.s32.totalorder %s23, 0
      %p133 = por %p131, %p132
      %p134 = scmp.ne.s32.totalorder %s122, %s123
      %p135 = scmp.eq.s32.totalorder %s24, 1
      %p136 = por %p134, %p135
      %p138 = scmp.ne.s32.totalorder %s123, %s137
      %p139 = scmp.eq.s32.totalorder %s24, 0
      %p140 = por %p138, %p139
      %s142 = sadd.s32 %s141, 1
      %p145 = scmp.eq.s32.totalorder %s18, 1
      %p146 = scmp.ne.s32.totalorder %s141, %s143
      %p147 = scmp.eq.s32.totalorder %s18, 0
      %p148 = por %p146, %p147
      %p149 = scmp.ne.s32.totalorder %s141, %s143
      %p150 = scmp.eq.s32.totalorder %s23, 1
      %p151 = por %p149, %p150
      %p152 = scmp.ne.s32.totalorder %s143, %s144
      %p153 = scmp.eq.s32.totalorder %s23, 0
      %p154 = por %p152, %p153
      %p155 = scmp.ne.s32.totalorder %s143, %s144
      %p156 = scmp.eq.s32.totalorder %s24, 1
      %p157 = por %p155, %p156
      %p159 = scmp.ne.s32.totalorder %s144, %s158
      %p160 = scmp.eq.s32.totalorder %s24, 0
      %p161 = por %p159, %p160
      %p162 = scmp.le.s32.totalorder 1, %s18
      %p163 = scmp.lt.s32.totalorder %s18, 3
      %p164 = pnand %p162, %p163
      %p165 = pneg %p164
      // Predicated region
      $region9: #{tpu_custom_call.1} parent=5 // pred_check
        _
      $region10: #{tpu_custom_call.1} parent=5 // pred_check_branch
        %167 = sbr.rel (%p164) target = $region12
      $region11: #{tpu_custom_call.1} parent=5 // pred_region
        %s168 = ssub.s32 %s18, 1
        // Predicated region
        $region13: #{tpu_custom_call.1} parent=11 // pred_check
          %p169 = pneg %p91
        $region14: #{tpu_custom_call.1} parent=11 // pred_check_branch
          %171 = sbr.rel (%p169) target = $region16
        $region15: #{tpu_custom_call.1} parent=11 // pred_region
          _
        $region16: #{tpu_custom_call.1} parent=11 // pred_fallthru
          _
        // Predicated region
        $region17: #{tpu_custom_call.1} parent=11 // pred_check
          %p172 = pneg %p112
        $region18: #{tpu_custom_call.1} parent=11 // pred_check_branch
          %174 = sbr.rel (%p172) target = $region20
        $region19: #{tpu_custom_call.1} parent=11 // pred_region
          _
        $region20: #{tpu_custom_call.1} parent=11 // pred_fallthru
          _
        // Predicated region
        $region21: #{tpu_custom_call.1} parent=11 // pred_check
          %p175 = pneg %p133
        $region22: #{tpu_custom_call.1} parent=11 // pred_check_branch
          %177 = sbr.rel (%p175) target = $region24
        $region23: #{tpu_custom_call.1} parent=11 // pred_region
          _
        $region24: #{tpu_custom_call.1} parent=11 // pred_fallthru
          _
      $region12: #{tpu_custom_call.1} parent=5 // pred_fallthru
        _
      %p178 = scmp.lt.s32.totalorder %s18, 2
      // Predicated region
      $region25: #{tpu_custom_call.1} parent=5 // pred_check
        %p179 = pneg %p178
      $region26: #{tpu_custom_call.1} parent=5 // pred_check_branch
        %181 = sbr.rel (%p179) target = $region28
      $region27: #{tpu_custom_call.1} parent=5 // pred_region
        // Predicated region
        $region29: #{tpu_custom_call.1} parent=27 // pred_check
          %p182 = pneg %p38
        $region30: #{tpu_custom_call.1} parent=27 // pred_check_branch
          %184 = sbr.rel (%p182) target = $region32
        $region31: #{tpu_custom_call.1} parent=27 // pred_region
          %s185 = sand.u32 %s28, 1
          %s186 = scalar_lea.sflag [#allocation4], %s185
          %s187 = sand.u32 %s28, 1
          %s188 = smul.addr %s187, 16
          %s189 = scalar_lea.vmem [#allocation3], %s188
          %s190 = smul.u32 4, %s18
          %s192 = ssub.s32 256, 256
          %193 = vsyncadd %s186, %s192
          %s194 = smul.addr %s190, 64
          %s195 = scalar_lea.hbm %s0, %s194
          %s197 = sshll.u32 %s189, 4
          %s198 = int_to_ptr.vmem [resolvable:$true] %s197
          %200 = dma.hbm_to_vmem [thread:$0]  %s195, 256, %s198, %s186
        $region32: #{tpu_custom_call.1} parent=27 // pred_fallthru
          _
        // Predicated region
        $region33: #{tpu_custom_call.1} parent=27 // pred_check
          %p201 = pneg %p64
        $region34: #{tpu_custom_call.1} parent=27 // pred_check_branch
          %203 = sbr.rel (%p201) target = $region36
        $region35: #{tpu_custom_call.1} parent=27 // pred_region
          %s204 = sand.u32 %s54, 1
          %s205 = scalar_lea.sflag [#allocation7], %s204
          %s206 = sand.u32 %s54, 1
          %s207 = smul.addr %s206, 256
          %s208 = scalar_lea.vmem [#allocation6], %s207
          %s209 = smul.u32 64, %s18
          %s211 = ssub.s32 4096, 4096
          %212 = vsyncadd %s205, %s211
          %s213 = smul.addr %s209, 64
          %s214 = scalar_lea.hbm %s1, %s213
          %s215 = sshll.u32 %s208, 4
          %s216 = int_to_ptr.vmem [resolvable:$true] %s215
          %221 = dma.hbm_to_vmem [thread:$0]  %s214, 4096, %s216, %s205, 64, 64, 4
        $region36: #{tpu_custom_call.1} parent=27 // pred_fallthru
          _
      $region28: #{tpu_custom_call.1} parent=5 // pred_fallthru
        _
      %p222 = scmp.le.s32.totalorder 1, %s18
      %p223 = scmp.lt.s32.totalorder %s18, 3
      %p224 = pnand %p222, %p223
      %p225 = pneg %p224
      // Predicated region
      $region37: #{tpu_custom_call.1} parent=5 // pred_check
        _
      $region38: #{tpu_custom_call.1} parent=5 // pred_check_branch
        %227 = sbr.rel (%p224) target = $region40
      $region39: #{tpu_custom_call.1} parent=5 // pred_region
        %s228 = ssub.s32 %s18, 1
        %s229 = sand.u32 %s31, 1
        %s230 = scalar_lea.sflag [#allocation4], %s229
        %s231 = sand.u32 %s31, 1
        %s232 = smul.addr %s231, 16
        %s233 = scalar_lea.vmem [#allocation3], %s232
        // Predicated region
        $region41: #{tpu_custom_call.1} parent=39 // pred_check
          %p234 = pneg %p44
        $region42: #{tpu_custom_call.1} parent=39 // pred_check_branch
          %236 = sbr.rel (%p234) target = $region44
        $region43: #{tpu_custom_call.1} parent=39 // pred_region
          %237 = dma.done %s230, 256
        $region44: #{tpu_custom_call.1} parent=39 // pred_fallthru
          _
        %s238 = sand.u32 %s57, 1
        %s239 = scalar_lea.sflag [#allocation7], %s238
        %s240 = sand.u32 %s57, 1
        %s241 = smul.addr %s240, 256
        %s242 = scalar_lea.vmem [#allocation6], %s241
        // Predicated region
        $region45: #{tpu_custom_call.1} parent=39 // pred_check
          %p243 = pneg %p70
        $region46: #{tpu_custom_call.1} parent=39 // pred_check_branch
          %245 = sbr.rel (%p243) target = $region48
        $region47: #{tpu_custom_call.1} parent=39 // pred_region
          %246 = dma.done %s239, 4096
        $region48: #{tpu_custom_call.1} parent=39 // pred_fallthru
          _
        %s247 = sand.u32 %s31, 1
        %s248 = scalar_lea.sflag [#allocation4], %s247
        %s249 = sand.u32 %s31, 1
        %s250 = smul.addr %s249, 16
        %s251 = scalar_lea.vmem [#allocation3], %s250
        %p252 = pneg %p44
        %p253 = pneg %p41
        %s254 = sand.u32 %s57, 1
        %s255 = scalar_lea.sflag [#allocation7], %s254
        %s256 = sand.u32 %s57, 1
        %s257 = smul.addr %s256, 256
        %s258 = scalar_lea.vmem [#allocation6], %s257
        %p259 = pneg %p70
        %p260 = pneg %p67
        %p261 = pneg %p91
        %p262 = pneg %p88
        %p263 = pneg %p112
        %p264 = pneg %p109
        %p265 = pneg %p133
        %p266 = pneg %p130
        %p267 = pneg %p154
        %p268 = pneg %p151
        %s269 = smul.u32 4, %s23
        %s270 = smul.u32 64, %s23
        %p272 = scmp.eq.s32.totalorder %s23, 0
        // Predicated region
        $region49: #{tpu_custom_call.1} parent=39 // pred_check
          %p273 = pneg %p272
        $region50: #{tpu_custom_call.1} parent=39 // pred_check_branch
          %275 = sbr.rel (%p273) target = $region52
        $region51: #{tpu_custom_call.1} parent=39 // pred_region
          %276 = vst [vmem:[#allocation2] sm:$0xff] 0.0
        $region52: #{tpu_custom_call.1} parent=39 // pred_fallthru
          _
        %v277 = vld [vmem:[#allocation2] sm:$0xff]
        %v278 = vld [vmem:[%s233] sm:$0xff]
        %v279 = vld [vmem:[%s233 + $0x8] sm:$0xff]
        %v280 = vld [vmem:[%s242] sm:$0xf]
        %v281 = vld [vmem:[%s242 + $0x4] sm:$0xf]
        %v282 = vld [vmem:[%s242 + $0x8] sm:$0xf]
        %v283 = vld [vmem:[%s242 + $0xc] sm:$0xf]
        %v284 = vld [vmem:[%s242 + $0x10] sm:$0xf]
        %v285 = vld [vmem:[%s242 + $0x14] sm:$0xf]
        %v286 = vld [vmem:[%s242 + $0x18] sm:$0xf]
        %v287 = vld [vmem:[%s242 + $0x1c] sm:$0xf]
        %v288 = vld [vmem:[%s242 + $0x20] sm:$0xf]
        %v289 = vld [vmem:[%s242 + $0x24] sm:$0xf]
        %v290 = vld [vmem:[%s242 + $0x28] sm:$0xf]
        %v291 = vld [vmem:[%s242 + $0x2c] sm:$0xf]
        %v292 = vld [vmem:[%s242 + $0x30] sm:$0xf]
        %v293 = vld [vmem:[%s242 + $0x34] sm:$0xf]
        %v294 = vld [vmem:[%s242 + $0x38] sm:$0xf]
        %v295 = vld [vmem:[%s242 + $0x3c] sm:$0xf]
        %v296 = vld [vmem:[%s242 + $0x40] sm:$0xf]
        %v297 = vld [vmem:[%s242 + $0x44] sm:$0xf]
        %v298 = vld [vmem:[%s242 + $0x48] sm:$0xf]
        %v299 = vld [vmem:[%s242 + $0x4c] sm:$0xf]
        %v300 = vld [vmem:[%s242 + $0x50] sm:$0xf]
        %v301 = vld [vmem:[%s242 + $0x54] sm:$0xf]
        %v302 = vld [vmem:[%s242 + $0x58] sm:$0xf]
        %v303 = vld [vmem:[%s242 + $0x5c] sm:$0xf]
        %v304 = vld [vmem:[%s242 + $0x60] sm:$0xf]
        %v305 = vld [vmem:[%s242 + $0x64] sm:$0xf]
        %v306 = vld [vmem:[%s242 + $0x68] sm:$0xf]
        %v307 = vld [vmem:[%s242 + $0x6c] sm:$0xf]
        %v308 = vld [vmem:[%s242 + $0x70] sm:$0xf]
        %v309 = vld [vmem:[%s242 + $0x74] sm:$0xf]
        %v310 = vld [vmem:[%s242 + $0x78] sm:$0xf]
        %v311 = vld [vmem:[%s242 + $0x7c] sm:$0xf]
        %v312 = vld [vmem:[%s242 + $0x80] sm:$0xf]
        %v313 = vld [vmem:[%s242 + $0x84] sm:$0xf]
        %v314 = vld [vmem:[%s242 + $0x88] sm:$0xf]
        %v315 = vld [vmem:[%s242 + $0x8c] sm:$0xf]
        %v316 = vld [vmem:[%s242 + $0x90] sm:$0xf]
        %v317 = vld [vmem:[%s242 + $0x94] sm:$0xf]
        %v318 = vld [vmem:[%s242 + $0x98] sm:$0xf]
        %v319 = vld [vmem:[%s242 + $0x9c] sm:$0xf]
        %v320 = vld [vmem:[%s242 + $0xa0] sm:$0xf]
        %v321 = vld [vmem:[%s242 + $0xa4] sm:$0xf]
        %v322 = vld [vmem:[%s242 + $0xa8] sm:$0xf]
        %v323 = vld [vmem:[%s242 + $0xac] sm:$0xf]
        %v324 = vld [vmem:[%s242 + $0xb0] sm:$0xf]
        %v325 = vld [vmem:[%s242 + $0xb4] sm:$0xf]
        %v326 = vld [vmem:[%s242 + $0xb8] sm:$0xf]
        %v327 = vld [vmem:[%s242 + $0xbc] sm:$0xf]
        %v328 = vld [vmem:[%s242 + $0xc0] sm:$0xf]
        %v329 = vld [vmem:[%s242 + $0xc4] sm:$0xf]
        %v330 = vld [vmem:[%s242 + $0xc8] sm:$0xf]
        %v331 = vld [vmem:[%s242 + $0xcc] sm:$0xf]
        %v332 = vld [vmem:[%s242 + $0xd0] sm:$0xf]
        %v333 = vld [vmem:[%s242 + $0xd4] sm:$0xf]
        %v334 = vld [vmem:[%s242 + $0xd8] sm:$0xf]
        %v335 = vld [vmem:[%s242 + $0xdc] sm:$0xf]
        %v336 = vld [vmem:[%s242 + $0xe0] sm:$0xf]
        %v337 = vld [vmem:[%s242 + $0xe4] sm:$0xf]
        %v338 = vld [vmem:[%s242 + $0xe8] sm:$0xf]
        %v339 = vld [vmem:[%s242 + $0xec] sm:$0xf]
        %v340 = vld [vmem:[%s242 + $0xf0] sm:$0xf]
        %v341 = vld [vmem:[%s242 + $0xf4] sm:$0xf]
        %v342 = vld [vmem:[%s242 + $0xf8] sm:$0xf]
        %v343 = vld [vmem:[%s242 + $0xfc] sm:$0xf]
        %v346 = vunpack.c.l.b16 %v278
        %v347 = vunpack.c.h.b16 %v278
        %v348 = vunpack.c.l.b16 %v279
        %v349 = vunpack.c.h.b16 %v279
        %v350 = vpack.c.b16 %v346, %v346
        %v351 = vpack.c.b16 %v347, %v347
        %v352 = vpack.c.b16 %v348, %v348
        %v353 = vpack.c.b16 %v349, %v349
        %v422 = vunpack.c.l.b16 %v280
        %v423 = vunpack.c.l.b16 %v281
        %v424 = vunpack.c.l.b16 %v282
        %v425 = vunpack.c.l.b16 %v283
        %v426 = vunpack.c.l.b16 %v284
        %v427 = vunpack.c.l.b16 %v285
        %v428 = vunpack.c.l.b16 %v286
        %v429 = vunpack.c.l.b16 %v287
        %v430 = vunpack.c.l.b16 %v288
        %v431 = vunpack.c.l.b16 %v289
        %v432 = vunpack.c.l.b16 %v290
        %v433 = vunpack.c.l.b16 %v291
        %v434 = vunpack.c.l.b16 %v292
        %v435 = vunpack.c.l.b16 %v293
        %v436 = vunpack.c.l.b16 %v294
        %v437 = vunpack.c.l.b16 %v295
        %v438 = vunpack.c.l.b16 %v296
        %v439 = vunpack.c.l.b16 %v297
        %v440 = vunpack.c.l.b16 %v298
        %v441 = vunpack.c.l.b16 %v299
        %v442 = vunpack.c.l.b16 %v300
        %v443 = vunpack.c.l.b16 %v301
        %v444 = vunpack.c.l.b16 %v302
        %v445 = vunpack.c.l.b16 %v303
        %v446 = vunpack.c.l.b16 %v304
        %v447 = vunpack.c.l.b16 %v305
        %v448 = vunpack.c.l.b16 %v306
        %v449 = vunpack.c.l.b16 %v307
        %v450 = vunpack.c.l.b16 %v308
        %v451 = vunpack.c.l.b16 %v309
        %v452 = vunpack.c.l.b16 %v310
        %v453 = vunpack.c.l.b16 %v311
        %v454 = vunpack.c.l.b16 %v312
        %v455 = vunpack.c.l.b16 %v313
        %v456 = vunpack.c.l.b16 %v314
        %v457 = vunpack.c.l.b16 %v315
        %v458 = vunpack.c.l.b16 %v316
        %v459 = vunpack.c.l.b16 %v317
        %v460 = vunpack.c.l.b16 %v318
        %v461 = vunpack.c.l.b16 %v319
        %v462 = vunpack.c.l.b16 %v320
        %v463 = vunpack.c.l.b16 %v321
        %v464 = vunpack.c.l.b16 %v322
        %v465 = vunpack.c.l.b16 %v323
        %v466 = vunpack.c.l.b16 %v324
        %v467 = vunpack.c.l.b16 %v325
        %v468 = vunpack.c.l.b16 %v326
        %v469 = vunpack.c.l.b16 %v327
        %v470 = vunpack.c.l.b16 %v328
        %v471 = vunpack.c.l.b16 %v329
        %v472 = vunpack.c.l.b16 %v330
        %v473 = vunpack.c.l.b16 %v331
        %v474 = vunpack.c.l.b16 %v332
        %v475 = vunpack.c.l.b16 %v333
        %v476 = vunpack.c.l.b16 %v334
        %v477 = vunpack.c.l.b16 %v335
        %v478 = vunpack.c.l.b16 %v336
        %v479 = vunpack.c.l.b16 %v337
        %v480 = vunpack.c.l.b16 %v338
        %v481 = vunpack.c.l.b16 %v339
        %v482 = vunpack.c.l.b16 %v340
        %v483 = vunpack.c.l.b16 %v341
        %v484 = vunpack.c.l.b16 %v342
        %v485 = vunpack.c.l.b16 %v343
        %v486 = vpack.c.b16 %v423, %v422
        %v487 = vpack.c.b16 %v425, %v424
        %v488 = vpack.c.b16 %v427, %v426
        %v489 = vpack.c.b16 %v429, %v428
        %v490 = vpack.c.b16 %v431, %v430
        %v491 = vpack.c.b16 %v433, %v432
        %v492 = vpack.c.b16 %v435, %v434
        %v493 = vpack.c.b16 %v437, %v436
        %v494 = vpack.c.b16 %v439, %v438
        %v495 = vpack.c.b16 %v441, %v440
        %v496 = vpack.c.b16 %v443, %v442
        %v497 = vpack.c.b16 %v445, %v444
        %v498 = vpack.c.b16 %v447, %v446
        %v499 = vpack.c.b16 %v449, %v448
        %v500 = vpack.c.b16 %v451, %v450
        %v501 = vpack.c.b16 %v453, %v452
        %v502 = vpack.c.b16 %v455, %v454
        %v503 = vpack.c.b16 %v457, %v456
        %v504 = vpack.c.b16 %v459, %v458
        %v505 = vpack.c.b16 %v461, %v460
        %v506 = vpack.c.b16 %v463, %v462
        %v507 = vpack.c.b16 %v465, %v464
        %v508 = vpack.c.b16 %v467, %v466
        %v509 = vpack.c.b16 %v469, %v468
        %v510 = vpack.c.b16 %v471, %v470
        %v511 = vpack.c.b16 %v473, %v472
        %v512 = vpack.c.b16 %v475, %v474
        %v513 = vpack.c.b16 %v477, %v476
        %v514 = vpack.c.b16 %v479, %v478
        %v515 = vpack.c.b16 %v481, %v480
        %v516 = vpack.c.b16 %v483, %v482
        %v517 = vpack.c.b16 %v485, %v484
        %550 = vmatprep.subr.bf16.mxu0 0
        %551 = vmatpush1.bf16.msra.mxu0 %v486
        %552 = vmatprep.subr.bf16.mxu0 0
        %553 = vmatpush1.bf16.msra.mxu0 %v487
        %554 = vmatprep.subr.bf16.mxu0 0
        %555 = vmatpush1.bf16.msra.mxu0 %v488
        %556 = vmatprep.subr.bf16.mxu0 0
        %557 = vmatpush1.bf16.msra.mxu0 %v489
        %558 = vmatprep.subr.bf16.mxu0 0
        %559 = vmatpush1.bf16.msra.mxu0 %v490
        %560 = vmatprep.subr.bf16.mxu0 0
        %561 = vmatpush1.bf16.msra.mxu0 %v491
        %562 = vmatprep.subr.bf16.mxu0 0
        %563 = vmatpush1.bf16.msra.mxu0 %v492
        %564 = vmatprep.subr.bf16.mxu0 0
        %565 = vmatpush1.bf16.msra.mxu0 %v493
        %566 = vmatprep.subr.bf16.mxu0 0
        %567 = vmatpush1.bf16.msra.mxu0 %v494
        %568 = vmatprep.subr.bf16.mxu0 0
        %569 = vmatpush1.bf16.msra.mxu0 %v495
        %570 = vmatprep.subr.bf16.mxu0 0
        %571 = vmatpush1.bf16.msra.mxu0 %v496
        %572 = vmatprep.subr.bf16.mxu0 0
        %573 = vmatpush1.bf16.msra.mxu0 %v497
        %574 = vmatprep.subr.bf16.mxu0 0
        %575 = vmatpush1.bf16.msra.mxu0 %v498
        %576 = vmatprep.subr.bf16.mxu0 0
        %577 = vmatpush1.bf16.msra.mxu0 %v499
        %578 = vmatprep.subr.bf16.mxu0 0
        %579 = vmatpush1.bf16.msra.mxu0 %v500
        %580 = vmatprep.subr.bf16.mxu0 0
        %581 = vmatpush1.bf16.msra.mxu0 %v501
        %582 = vmatprep.mubr.bf16.mxu0 %v351
        %583 = vmatmul.mubr.bf16.gmra.mrb[0].mxu0 %v350
        %v584 = vpop.f32.mrb[0].mxu0
        %v585 = vadd.f32 0.0, %v584
        %v586 = vpop.f32.mrb[0].mxu0
        %v587 = vpop.f32.mrb[0].mxu0
        %v588 = vpop.f32.mrb[0].mxu0
        %589 = vdwg.mxu0
        %590 = vmatprep.subr.bf16.mxu0 0
        %591 = vmatpush1.bf16.msra.mxu0 %v502
        %592 = vmatprep.subr.bf16.mxu0 0
        %593 = vmatpush1.bf16.msra.mxu0 %v503
        %594 = vmatprep.subr.bf16.mxu0 0
        %595 = vmatpush1.bf16.msra.mxu0 %v504
        %596 = vmatprep.subr.bf16.mxu0 0
        %597 = vmatpush1.bf16.msra.mxu0 %v505
        %598 = vmatprep.subr.bf16.mxu0 0
        %599 = vmatpush1.bf16.msra.mxu0 %v506
        %600 = vmatprep.subr.bf16.mxu0 0
        %601 = vmatpush1.bf16.msra.mxu0 %v507
        %602 = vmatprep.subr.bf16.mxu0 0
        %603 = vmatpush1.bf16.msra.mxu0 %v508
        %604 = vmatprep.subr.bf16.mxu0 0
        %605 = vmatpush1.bf16.msra.mxu0 %v509
        %606 = vmatprep.subr.bf16.mxu0 0
        %607 = vmatpush1.bf16.msra.mxu0 %v510
        %608 = vmatprep.subr.bf16.mxu0 0
        %609 = vmatpush1.bf16.msra.mxu0 %v511
        %610 = vmatprep.subr.bf16.mxu0 0
        %611 = vmatpush1.bf16.msra.mxu0 %v512
        %612 = vmatprep.subr.bf16.mxu0 0
        %613 = vmatpush1.bf16.msra.mxu0 %v513
        %614 = vmatprep.subr.bf16.mxu0 0
        %615 = vmatpush1.bf16.msra.mxu0 %v514
        %616 = vmatprep.subr.bf16.mxu0 0
        %617 = vmatpush1.bf16.msra.mxu0 %v515
        %618 = vmatprep.subr.bf16.mxu0 0
        %619 = vmatpush1.bf16.msra.mxu0 %v516
        %620 = vmatprep.subr.bf16.mxu0 0
        %621 = vmatpush1.bf16.msra.mxu0 %v517
        %622 = vmatprep.mubr.bf16.mxu0 %v353
        %623 = vmatmul.mubr.bf16.gmra.mrb[0].mxu0 %v352
        %v624 = vpop.f32.mrb[0].mxu0
        %v625 = vadd.f32 %v585, %v624
        %v626 = vpop.f32.mrb[0].mxu0
        %v627 = vpop.f32.mrb[0].mxu0
        %v628 = vpop.f32.mrb[0].mxu0
        %629 = vdwg.mxu0
        %v630 = vadd.f32 %v277, %v625
        %631 = vst [vmem:[#allocation2] sm:$0xff] %v630
        %p632 = scmp.eq.s32.totalorder %s23, 1
        // Predicated region
        $region53: #{tpu_custom_call.1} parent=39 // pred_check
          %p633 = pneg %p632
        $region54: #{tpu_custom_call.1} parent=39 // pred_check_branch
          %635 = sbr.rel (%p633) target = $region56
        $region55: #{tpu_custom_call.1} parent=39 // pred_region
          %v636 = vld [vmem:[#allocation2] sm:$0xff]
          %v637 = vld [vmem:[%s2] sm:$0x1]
          %v639 = vlaneseq
          %v640 = vshrl.u32 %v639, 7
          %v641 = vsub.s32 0, %v640
          %v642 = vrot.slane %v637, %v641
          %v644 = vadd.f32 %v636, %v642
          %v645 = vmul.f32 %v644, %v644
          %646 = vadd.xlane.f32.xlu0 %v645
          %v647 = vpop.xlane.xlu0 %646
          %v648 = vrsqrt.pop %v647
          %v649 = vmul.f32 %v647, %v648
          %vm650 = vcmp.eq.f32.partialorder %v647, inf
          %v651 = vsel %vm650, %v647, %v649
          %vm652 = vcmp.eq.f32.partialorder %v647, 0.0
          %v653 = vand.u32 %v647, 2147483648
          %v654 = vsel %vm652, %v653, %v651
          %v655 = vsub.f32 20.0, %v654
          %v656 = vmax.f32 %v655, 0.0
          %v657 = vld [vmem:[%s3] sm:$0xff]
          %v658 = vmul.f32 %v657, %v647
          %v659 = vld [vmem:[%s4] sm:$0xff]
          %v660 = vmul.f32 %v659, %v656
          %v661 = vmul.f32 %v660, %v656
          %v662 = vadd.f32 %v658, %v661
          %vm663 = vcmask 7168
          %v664 = vsel %vm663, %v662, 0.0
          %665 = vadd.xlane.f32.xlu0 %v664
          %v666 = vpop.xlane.xlu0 %665
          %v667 = vrot.slane %v666, 4
          %v668 = vadd.f32 %v666, %v667
          %v669 = vrot.slane %v668, 2
          %v670 = vadd.f32 %v668, %v669
          %v671 = vrot.slane %v670, 1
          %v672 = vadd.f32 %v670, %v671
          %s673 = vtos %v672
          %s674 = scalar_lea.smem [#allocation8], 0
          %675 = sst [smem:[%s674]] %s673
        $region56: #{tpu_custom_call.1} parent=39 // pred_fallthru
          _
        // Predicated region
        $region57: #{tpu_custom_call.1} parent=39 // pred_check
          %p676 = pneg %p151
        $region58: #{tpu_custom_call.1} parent=39 // pred_check_branch
          %678 = sbr.rel (%p676) target = $region60
        $region59: #{tpu_custom_call.1} parent=39 // pred_region
          %s680 = ssub.s32 16, 16
          %681 = vsyncadd [#allocation5], %s680
          %684 = dma.smem_to_hbm [#allocation8], 16, %s5, [#allocation5]
        $region60: #{tpu_custom_call.1} parent=39 // pred_fallthru
          _
        // Predicated region
        $region61: #{tpu_custom_call.1} parent=39 // pred_check
          %p685 = pneg %p151
        $region62: #{tpu_custom_call.1} parent=39 // pred_check_branch
          %687 = sbr.rel (%p685) target = $region64
        $region63: #{tpu_custom_call.1} parent=39 // pred_region
          %688 = dma.done [#allocation5], 16
        $region64: #{tpu_custom_call.1} parent=39 // pred_fallthru
          _
        %689 = sfence
      $region40: #{tpu_custom_call.1} parent=5 // pred_fallthru
        _
      %p690 = scmp.le.s32.totalorder 2, %s18
      // Predicated region
      $region65: #{tpu_custom_call.1} parent=5 // pred_check
        %p691 = pneg %p690
      $region66: #{tpu_custom_call.1} parent=5 // pred_check_branch
        %693 = sbr.rel (%p691) target = $region68
      $region67: #{tpu_custom_call.1} parent=5 // pred_region
        %s694 = ssub.s32 %s18, 2
      $region68: #{tpu_custom_call.1} parent=5 // pred_fallthru
        _
    $region6: #{tpu_custom_call.1} parent=1 // loop_footer
      %s22 = sadd.s32 1, %s18
    $region7: #{tpu_custom_call.1} parent=1 // loop_footer_branch
      %17 = sbr.rel target = $region3
    $region8: #{tpu_custom_call.1} parent=1 // loop_exit
      _
    %695 = vsyncpa [#allocation4], 1
    %s696 = scalar_lea.sflag [#allocation4], 1
    %697 = vsyncpa %s696, 1
    %698 = vsyncpa [#allocation7], 1
    %s699 = scalar_lea.sflag [#allocation7], 1
    %700 = vsyncpa %s699, 1
    %701 = vsyncpa [#allocation5], 1
    %s702 = scalar_lea.sflag [#allocation5], 1
    %703 = vsyncpa %s702, 1

</llo_original>
